<compile_context>
chip_gen: v7x
topology: tpu7x:2x2x1
jax: 0.10.0
libtpu: 0.0.40
codegen_flags: <defaults>
</compile_context>

<pallas_src>
import functools

import jax
import jax.numpy as jnp
from jax.experimental import pallas as pl
from jax.experimental.pallas import tpu as pltpu


def _round_up(n, m):
    return ((n + m - 1) // m) * m


def _out_pad_multiple():
    """Lane padding for the output dim: 256 on 256-wide MXUs (v6e/v7x), else 128."""
    try:
        kind = jax.devices()[0].device_kind.lower()
    except Exception:
        return 128
    if ("v6" in kind) or ("v7" in kind) or ("7x" in kind):
        return 256
    return 128


def _linear_softmax_kernel(x_ref, w_ref, bias_ref, o_ref, *, apply_mask):
    # x_ref:    [TB, D]      float32  (cast to bf16 here; MXU-native input dtype)
    # w_ref:    [D, O_pad]   bfloat16 (grid-invariant, pre-transposed in wrapper)
    # bias_ref: [1, O_pad]   float32  (0 for valid cols, -1e30 for lane padding)
    # o_ref:    [TB, O_pad]  float32
    x = x_ref[...].astype(jnp.bfloat16)

    # Plain NN contraction on the MXU, f32 accumulation.
    h = jnp.dot(x, w_ref[...], preferred_element_type=jnp.float32)  # [TB, O_pad]

    if apply_mask:
        # One vadd against a precomputed, grid-invariant mask row (cheaper than
        # regenerating iota + cmp + select every grid step).
        h = h + bias_ref[...]

    # Numerically stable softmax over the output (last) axis == torch dim=1,
    # all in f32.  Padded columns carry -1e30 -> exp underflows to 0.
    m = jnp.max(h, axis=-1, keepdims=True)
    e = jnp.exp(h - m)
    denom = jnp.sum(e, axis=-1, keepdims=True)

    # EUP approximate reciprocal + one Newton-Raphson step: keeps the divide in
    # the otherwise-idle EUP slot while recovering near-exact f32 accuracy.
    r = pl.reciprocal(denom, approx=True)
    r = r * (2.0 - denom * r)

    o_ref[...] = (e * r).astype(o_ref.dtype)


def neural_net_forward(x, weight, *, block_b=512):
    """Forward of NeuralNet: softmax(x @ weight.T, axis=1).

    x:      [B, vector_size]             float32
    weight: [output_size, vector_size]   float32 (PyTorch nn.Linear layout)
    returns [B, output_size]             float32
    """
    B, D = x.shape
    O, D_w = weight.shape
    assert D == D_w, "weight/vector_size mismatch"

    # ---- weight prep (one-time, grid-invariant) -----------------------------
    lane_mult = _out_pad_multiple()
    O_pad = _round_up(O, lane_mult)
    apply_mask = O_pad != O

    w = weight
    if apply_mask:
        w = jnp.pad(w, ((0, O_pad - O), (0, 0)))
    # One-time transpose to [D, O_pad] (kernel runs the standard contraction, no
    # per-grid-step transpose of the resident weight) + one-time bf16 cast
    # (native MXU input; halves the VMEM-resident weight bytes).
    w_t = w.T.astype(jnp.bfloat16)

    # Additive column-mask row: 0 for valid output columns, -1e30 for padding.
    col = jnp.arange(O_pad, dtype=jnp.int32)
    bias = jnp.where(col < O, 0.0, -1e30).astype(jnp.float32)[None, :]  # [1, O_pad]

    # ---- batch tiling --------------------------------------------------------
    # No batch padding: grid = cdiv(B, TB); Pallas masks the ragged last tile on
    # store, so any garbage rows in that tile never land in the output.
    TB = min(block_b, _round_up(B, 8))

    # Keep the tile working set comfortably inside the smallest per-core VMEM we
    # target (v7x: 64 MiB physical / 32 MiB default scoped; v5e: 16 MiB scoped
    # default), leaving headroom for compiler scratch.
    def tile_vmem_bytes(tb):
        return (2 * tb * D * 4          # x tiles   (f32, double-buffered)
                + 2 * tb * O_pad * 4    # out tiles (f32, double-buffered)
                + 2 * O_pad * D * 2     # resident bf16 weight (2 bufs, worst case)
                + 2 * O_pad * 4)        # mask row

    VMEM_BUDGET = 40 << 20
    while TB > 8 and tile_vmem_bytes(TB) > VMEM_BUDGET:
        TB = _round_up(TB // 2, 8)

    # v7x has 2 TensorCores per chip: ensure the (parallel) batch grid has at
    # least 2 tiles whenever the batch allows it.
    if pl.cdiv(B, TB) < 2 and B > 8:
        TB = _round_up(pl.cdiv(B, 2), 8)

    grid_b = pl.cdiv(B, TB)
    vmem_limit_bytes = int(
        min(max(tile_vmem_bytes(TB) + (8 << 20), 16 << 20), 56 << 20))

    # TODO(synk): for very large vector_size D, add a K grid axis (last,
    # "arbitrary") with an f32 VMEM accumulator and do the mask+softmax+store in
    # a pl.when(k == num_programs(K)-1) epilogue instead of full-D blocks.

    kernel = functools.partial(_linear_softmax_kernel, apply_mask=apply_mask)

    out = pl.pallas_call(
        kernel,
        out_shape=jax.ShapeDtypeStruct((B, O_pad), jnp.float32),
        grid_spec=pltpu.PrefetchScalarGridSpec(
            num_scalar_prefetch=0,
            grid=(grid_b,),
            in_specs=[
                # x: tiled along batch; double-buffered by the BlockSpec pipeline.
                pl.BlockSpec((TB, D), lambda i: (i, 0)),
                # weight^T (bf16): constant index_map -> fetched once, VMEM-resident.
                pl.BlockSpec((D, O_pad), lambda i: (0, 0)),
                # mask row: constant index_map, grid-invariant.
                pl.BlockSpec((1, O_pad), lambda i: (0, 0)),
            ],
            out_specs=pl.BlockSpec((TB, O_pad), lambda i: (i, 0)),
        ),
        compiler_params=pltpu.CompilerParams(
            # Batch tiles are independent -> shard grid across TCs (v7x megacore).
            dimension_semantics=("parallel",),
            vmem_limit_bytes=vmem_limit_bytes,
        ),
        cost_estimate=pl.CostEstimate(
            flops=2 * B * D * O_pad,
            transcendentals=B * O_pad,
            bytes_accessed=4 * B * D + 2 * O_pad * D + 4 * O_pad + 4 * B * O_pad,
        ),
    )(x, w_t, bias)

    # Strip lane padding only (no batch padding was added).
    return out[:, :O] if apply_mask else out


def neural_net_reference(x, weight):
    h = x @ weight.T
    h = h - jnp.max(h, axis=1, keepdims=True)
    e = jnp.exp(h)
    return e / jnp.sum(e, axis=1, keepdims=True)


if __name__ == "__main__":
    # Small shapes consistent with the module: batch=8, vector_size=32, output_size=4
    B, VECTOR_SIZE, OUTPUT_SIZE = 8, 32, 4

    key = jax.random.PRNGKey(0)
    kx, kw = jax.random.split(key)
    x = jax.random.normal(kx, (B, VECTOR_SIZE), dtype=jnp.float32)
    # Deterministic init matching nn.Linear weight shape: [output_size, vector_size]
    bound = 1.0 / (VECTOR_SIZE ** 0.5)
    weight = jax.random.uniform(
        kw, (OUTPUT_SIZE, VECTOR_SIZE), dtype=jnp.float32,
        minval=-bound, maxval=bound)

    out = jax.block_until_ready(neural_net_forward(x, weight))
    ref = neural_net_reference(x, weight)

    assert out.shape == (B, OUTPUT_SIZE)
    # bf16 MXU inputs (f32 accumulation + f32 softmax) -> modest tolerance.
    assert jnp.allclose(out, ref, atol=1e-2, rtol=1e-2), "mismatch vs reference"
    # rows of a softmax sum to 1
    assert jnp.allclose(jnp.sum(out, axis=1), jnp.ones((B,)), atol=1e-3)

    print("KERNEL_OK")
</pallas_src>

<mosaic_0001>
module attributes {stable_mosaic.version = 11 : i64} {
  func.func @_linear_softmax_kernel(%arg0: i32, %arg1: memref<8x32xf32, #tpu.memory_space<vmem>>, %arg2: memref<32x128xbf16, #tpu.memory_space<vmem>>, %arg3: memref<1x128xf32, #tpu.memory_space<vmem>>, %arg4: memref<8x128xf32, #tpu.memory_space<vmem>>) attributes {dimension_semantics = [#tpu.dimension_semantics<parallel>], iteration_bounds = array<i64: 1>, scalar_prefetch = 0 : i64, scratch_operands = 0 : i64, tpu.core_type = #tpu.core_type<tc>, window_params = [{transform_indices = @transform_0, window_bounds = array<i64: 8, 32>}, {pipeline_mode = #tpu.pipeline_mode<synchronous>, transform_indices = @transform_1, window_bounds = array<i64: 32, 128>}, {pipeline_mode = #tpu.pipeline_mode<synchronous>, transform_indices = @transform_2, window_bounds = array<i64: 1, 128>}, {transform_indices = @transform_3, window_bounds = array<i64: 8, 128>}]} {
    %c0 = arith.constant 0 : index
    %c0_0 = arith.constant 0 : index
    %0 = vector.load %arg1[%c0, %c0_0] : memref<8x32xf32, #tpu.memory_space<vmem>>, vector<8x32xf32>
    %1 = arith.truncf %0 : vector<8x32xf32> to vector<8x32xbf16>
    %c0_1 = arith.constant 0 : index
    %c0_2 = arith.constant 0 : index
    %2 = vector.load %arg2[%c0_1, %c0_2] : memref<32x128xbf16, #tpu.memory_space<vmem>>, vector<32x128xbf16>
    %cst = arith.constant dense<0.000000e+00> : vector<8x128xf32>
    %3 = tpu.matmul %1, %2, %cst {dimension_numbers = #tpu.dot_dimension_numbers<[1], [0], [0], [1], [0, 0, 1, 1], [], []>} : vector<8x32xbf16>, vector<32x128xbf16>, vector<8x128xf32> -> vector<8x128xf32>
    %c0_3 = arith.constant 0 : index
    %c0_4 = arith.constant 0 : index
    %4 = vector.load %arg3[%c0_3, %c0_4] : memref<1x128xf32, #tpu.memory_space<vmem>>, vector<1x128xf32>
    %5 = vector.broadcast %4 : vector<1x128xf32> to vector<8x128xf32>
    %6 = arith.addf %3, %5 : vector<8x128xf32>
    %cst_5 = arith.constant dense<0xFF800000> : vector<8xf32>
    %7 = vector.multi_reduction <maximumf>, %6, %cst_5 [1] : vector<8x128xf32> to vector<8xf32>
    %8 = vector.shape_cast %7 : vector<8xf32> to vector<8x1xf32>
    %9 = vector.broadcast %8 : vector<8x1xf32> to vector<8x128xf32>
    %10 = arith.subf %6, %9 : vector<8x128xf32>
    %11 = math.exp %10 : vector<8x128xf32>
    %cst_6 = arith.constant dense<0.000000e+00> : vector<8xf32>
    %12 = vector.multi_reduction <add>, %11, %cst_6 [1] : vector<8x128xf32> to vector<8xf32>
    %13 = vector.shape_cast %12 : vector<8xf32> to vector<8x1xf32>
    %14 = tpu.reciprocal %13 {approx = true} : vector<8x1xf32> -> vector<8x1xf32>
    %15 = arith.mulf %13, %14 : vector<8x1xf32>
    %cst_7 = arith.constant 2.000000e+00 : f32
    %16 = vector.broadcast %cst_7 : f32 to vector<8x1xf32>
    %17 = arith.subf %16, %15 : vector<8x1xf32>
    %18 = arith.mulf %14, %17 : vector<8x1xf32>
    %19 = vector.broadcast %18 : vector<8x1xf32> to vector<8x128xf32>
    %20 = arith.mulf %11, %19 : vector<8x128xf32>
    %c0_8 = arith.constant 0 : index
    %c0_9 = arith.constant 0 : index
    %21 = vector.load %arg4[%c0_8, %c0_9] : memref<8x128xf32, #tpu.memory_space<vmem>>, vector<8x128xf32>
    tpu.vector_store %arg4[%c0_8, %c0_9], %20 {strides = array<i32>} : memref<8x128xf32, #tpu.memory_space<vmem>>, vector<8x128xf32>,
    return
  }
  func.func @transform_0(%arg0: i32) -> (i32, i32) {
    %c0_i32 = arith.constant 0 : i32
    %c0_i32_0 = arith.constant 0 : i32
    return %arg0, %c0_i32 : i32, i32
  }
  func.func @transform_1(%arg0: i32) -> (i32, i32) {
    %c0_i32 = arith.constant 0 : i32
    %c0_i32_0 = arith.constant 0 : i32
    %c0_i32_1 = arith.constant 0 : i32
    return %c0_i32, %c0_i32_0 : i32, i32
  }
  func.func @transform_2(%arg0: i32) -> (i32, i32) {
    %c0_i32 = arith.constant 0 : i32
    %c0_i32_0 = arith.constant 0 : i32
    %c0_i32_1 = arith.constant 0 : i32
    return %c0_i32, %c0_i32_0 : i32, i32
  }
  func.func @transform_3(%arg0: i32) -> (i32, i32) {
    %c0_i32 = arith.constant 0 : i32
    %c0_i32_0 = arith.constant 0 : i32
    return %arg0, %c0_i32 : i32, i32
  }
}

</mosaic_0001>

<llo_original>
// kernel: tpu_custom_call.1
$region0: #{tpu_custom_call.1}
  #allocation0 [shape = 'u32[]', space=smem, size = 0x4, offset = 0x4, fixed_abs, tag = 'smem constant byte address 0x4 - core index']
  #allocation1 [shape = 'u32[144,128]{1,0:T(1,128)}', space=vmem, size = 0x12000, scoped, tag = 'internal scratch']
  %s0 = inlined_call_operand.hbm [shape: f32[8,32], index: 0, kind: input, shape index: {}]
  %s1 = inlined_call_operand.hbm [shape: bf16[32,128], index: 1, kind: input, shape index: {}]
  %s2 = inlined_call_operand.vmem [shape: f32[1,128], index: 2, kind: input, shape index: {}]
  %s3 = inlined_call_operand.hbm [shape: f32[8,128], index: 3, kind: output, shape index: {}]
  %s4 = sld [smem:[#allocation0]]
  $region30: #{tpu_custom_call.1} parent=0
    _
  %s6 = ssub.s32 1, %s4
  %s7 = scalar_select 0, %s6, %s4
  $region1: #{tpu_custom_call.1} parent=0
    #allocation2 [shape = 'u8[4096]{0}', space=vmem, size = 0x1000, scoped, tag = 'input window, operand 0, single buffered']
    #allocation3 [shape = 's32[1]{0}', space=sflag, size = 0x4, scoped, tag = 'scoped memory for tpu_custom_call.1']
    #allocation4 [shape = 's32[1]{0}', space=sflag, size = 0x4, scoped, tag = 'scoped memory for tpu_custom_call.1']
    #allocation5 [shape = 'u8[8192]{0}', space=vmem, size = 0x2000, scoped, tag = 'input window, operand 1, single buffered']
    #allocation6 [shape = 's32[1]{0}', space=sflag, size = 0x4, scoped, tag = 'scoped memory for tpu_custom_call.1']
    #allocation7 [shape = 'u8[4096]{0}', space=vmem, size = 0x1000, scoped, tag = 'output window, operand 0, single buffered']
    %8 = vsyncpa [#allocation3], 0
    %9 = vsyncpa [#allocation6], 0
    %10 = vsyncpa [#allocation4], 0
    // Predicated region
    $region2: #{tpu_custom_call.1} parent=1 // pred_check
      _
    $region3: #{tpu_custom_call.1} parent=1 // pred_check_branch
      %12 = sbr.rel (0) target = $region5
    $region4: #{tpu_custom_call.1} parent=1 // pred_region
      %s14 = ssub.s32 128, 128
      %15 = vsyncadd [#allocation3], %s14
      %s17 = sshll.u32 [#allocation2], 4
      %s18 = int_to_ptr.vmem [resolvable:$true] %s17
      %20 = dma.hbm_to_vmem [thread:$0]  %s0, 128, %s18, [#allocation3]
    $region5: #{tpu_custom_call.1} parent=1 // pred_fallthru
      _
    // Predicated region
    $region6: #{tpu_custom_call.1} parent=1 // pred_check
      _
    $region7: #{tpu_custom_call.1} parent=1 // pred_check_branch
      %22 = sbr.rel (0) target = $region9
    $region8: #{tpu_custom_call.1} parent=1 // pred_region
      %s24 = ssub.s32 256, 256
      %25 = vsyncadd [#allocation6], %s24
      %s26 = sshll.u32 [#allocation5], 4
      %s27 = int_to_ptr.vmem [resolvable:$true] %s26
      %32 = dma.hbm_to_vmem [thread:$0]  %s1, 256, %s27, [#allocation6], 64, 64, 4
    $region9: #{tpu_custom_call.1} parent=1 // pred_fallthru
      _
    // Predicated region
    $region10: #{tpu_custom_call.1} parent=1 // pred_check
      _
    $region11: #{tpu_custom_call.1} parent=1 // pred_check_branch
      %34 = sbr.rel (0) target = $region13
    $region12: #{tpu_custom_call.1} parent=1 // pred_region
      _
    $region13: #{tpu_custom_call.1} parent=1 // pred_fallthru
      _
    // Predicated region
    $region14: #{tpu_custom_call.1} parent=1 // pred_check
      _
    $region15: #{tpu_custom_call.1} parent=1 // pred_check_branch
      %36 = sbr.rel (0) target = $region17
    $region16: #{tpu_custom_call.1} parent=1 // pred_region
      %37 = dma.done [#allocation3], 128
    $region17: #{tpu_custom_call.1} parent=1 // pred_fallthru
      _
    // Predicated region
    $region18: #{tpu_custom_call.1} parent=1 // pred_check
      _
    $region19: #{tpu_custom_call.1} parent=1 // pred_check_branch
      %39 = sbr.rel (0) target = $region21
    $region20: #{tpu_custom_call.1} parent=1 // pred_region
      %40 = dma.done [#allocation6], 256
    $region21: #{tpu_custom_call.1} parent=1 // pred_fallthru
      _
    %v42 = vld [vmem:[#allocation2] sm:$0xff]
    %v43 = vpack.c.bf16 %v42, %v42
    %v44 = vld [vmem:[#allocation5] sm:$0xf]
    %v45 = vld [vmem:[#allocation5 + $0x4] sm:$0xf]
    %v46 = vld [vmem:[#allocation5 + $0x8] sm:$0xf]
    %v47 = vld [vmem:[#allocation5 + $0xc] sm:$0xf]
    %v48 = vld [vmem:[%s2] sm:$0x1]
    %v50 = vlaneseq
    %v51 = vshrl.u32 %v50, 7
    %v52 = vsub.s32 0, %v51
    %v53 = vrot.slane %v48, %v52
    %v59 = vunpack.c.l.b16 %v44
    %v60 = vunpack.c.l.b16 %v45
    %v61 = vunpack.c.l.b16 %v46
    %v62 = vunpack.c.l.b16 %v47
    %v63 = vpack.c.b16 %v60, %v59
    %v64 = vpack.c.b16 %v62, %v61
    %vm67 = vcmask 261120
    %v69 = vsel %vm67, %v43, 0
    %71 = vmatprep.subr.bf16.mxu0 0
    %72 = vmatpush1.bf16.msra.mxu0 %v63
    %73 = vmatprep.subr.bf16.mxu0 0
    %74 = vmatpush1.bf16.msra.mxu0 %v64
    %75 = vmatprep.subr.bf16.mxu0 0
    %76 = vmatpush1.bf16.msra.mxu0 0
    %77 = vmatprep.subr.bf16.mxu0 0
    %78 = vmatpush1.bf16.msra.mxu0 0
    %79 = vmatprep.subr.bf16.mxu0 0
    %80 = vmatpush1.bf16.msra.mxu0 0
    %81 = vmatprep.subr.bf16.mxu0 0
    %82 = vmatpush1.bf16.msra.mxu0 0
    %83 = vmatprep.subr.bf16.mxu0 0
    %84 = vmatpush1.bf16.msra.mxu0 0
    %85 = vmatprep.subr.bf16.mxu0 0
    %86 = vmatpush1.bf16.msra.mxu0 0
    %87 = vmatprep.subr.bf16.mxu0 0
    %88 = vmatpush1.bf16.msra.mxu0 0
    %89 = vmatprep.subr.bf16.mxu0 0
    %90 = vmatpush1.bf16.msra.mxu0 0
    %91 = vmatprep.subr.bf16.mxu0 0
    %92 = vmatpush1.bf16.msra.mxu0 0
    %93 = vmatprep.subr.bf16.mxu0 0
    %94 = vmatpush1.bf16.msra.mxu0 0
    %95 = vmatprep.subr.bf16.mxu0 0
    %96 = vmatpush1.bf16.msra.mxu0 0
    %97 = vmatprep.subr.bf16.mxu0 0
    %98 = vmatpush1.bf16.msra.mxu0 0
    %99 = vmatprep.subr.bf16.mxu0 0
    %100 = vmatpush1.bf16.msra.mxu0 0
    %101 = vmatprep.subr.bf16.mxu0 0
    %102 = vmatpush1.bf16.msra.mxu0 0
    %103 = vmatprep.mubr.bf16.mxu0 0
    %104 = vmatmul.mubr.bf16.gmra.mrb[0].mxu0 %v69
    %v105 = vpop.f32.mrb[0].mxu0
    %v106 = vadd.f32 %v53, %v105
    %v107 = vpop.f32.mrb[0].mxu0
    %v108 = vpop.f32.mrb[0].mxu0
    %v109 = vpop.f32.mrb[0].mxu0
    %110 = vdwg.mxu0
    %111 = vmax.xlane.f32.xlu0 %v106
    %v112 = vpop.xlane.xlu0 %111
    %v113 = vsub.f32 %v106, %v112
    %v114 = vmul.f32 %v113, 1.442695
    %v115 = vpow.pop %v114
    %116 = vadd.xlane.f32.xlu0 %v115
    %v117 = vpop.xlane.xlu0 %116
    %v118 = vrcp.pop %v117
    %v119 = vmul.f32 %v117, %v118
    %v120 = vsub.f32 2.0, %v119
    %v121 = vmul.f32 %v118, %v120
    %v122 = vmul.f32 %v115, %v121
    %123 = vst [vmem:[#allocation7] sm:$0xff] %v122
    // Predicated region
    $region22: #{tpu_custom_call.1} parent=1 // pred_check
      _
    $region23: #{tpu_custom_call.1} parent=1 // pred_check_branch
      %125 = sbr.rel (0) target = $region25
    $region24: #{tpu_custom_call.1} parent=1 // pred_region
      %s127 = ssub.s32 128, 128
      %128 = vsyncadd [#allocation4], %s127
      %s130 = sshll.u32 [#allocation7], 4
      %s131 = int_to_ptr.vmem [resolvable:$true] %s130
      %133 = dma.vmem_to_hbm [thread:$0]  %s131, 128, %s3, [#allocation4]
    $region25: #{tpu_custom_call.1} parent=1 // pred_fallthru
      _
    // Predicated region
    $region26: #{tpu_custom_call.1} parent=1 // pred_check
      _
    $region27: #{tpu_custom_call.1} parent=1 // pred_check_branch
      %135 = sbr.rel (0) target = $region29
    $region28: #{tpu_custom_call.1} parent=1 // pred_region
      %136 = dma.done [#allocation4], 128
    $region29: #{tpu_custom_call.1} parent=1 // pred_fallthru
      _
    %137 = vsyncpa [#allocation3], 1
    %138 = vsyncpa [#allocation6], 1
    %139 = vsyncpa [#allocation4], 1

</llo_original>
